<compile_context>
chip_gen: v7x
topology: tpu7x:2x2x1
jax: 0.10.0
libtpu: 0.0.40
codegen_flags: <defaults>
</compile_context>

<pallas_src>
import functools

import jax
import jax.numpy as jnp
from jax.experimental import pallas as pl
from jax.experimental.pallas import tpu as pltpu

_LANE = 128      # TPU lane width
_NC_PAD = 128    # scores padded to one full lane tile -> lane-dense stores


# ----------------------------------------------------------------------------
# Fused Pallas kernel: conv3x3 + bias + ReLU + global-avg-pool + FC
# ----------------------------------------------------------------------------
def _fused_net_kernel(x_ref, mask_ref, w_ref, bconv_ref, fcw_ref, fcb_ref,
                      feat_ref, scores_ref, *, h, w, c_out, b_blk):
    """One grid step == one batch block of `b_blk` images.

      X9     = stacked 3x3 taps            -> [9*C_in, B_blk*H*W]   (bf16)
      feat   = relu(W_flat @ X9 + b_conv)  -> [C_out,  B_blk*H*W]   (f32 acc)
      pooled = mean_hw(feat_b)             -> [C_out, 1]  per image
      scores = pooled . fc_w + fc_b        -> [1, NC_PAD] per image
    """
    hw = h * w

    # ---- Build the stacked conv operand in VMEM (no im2col in HBM). --------
    # Row order: tap-major (t = dh*3 + dw), channel-minor  -> matches W_flat.
    # Lane order: image-major (image b occupies lanes [b*hw, (b+1)*hw)).
    imgs = [x_ref[b] for b in range(b_blk)]              # each [C_in, flat_pad]
    taps = []
    for dh in range(3):
        for dw in range(3):
            off = dh * w + dw                            # static offset
            pieces = [img[:, off:off + hw] for img in imgs]       # [C_in, hw]
            taps.append(jnp.concatenate(pieces, axis=-1) if b_blk > 1
                        else pieces[0])                  # [C_in, b_blk*hw]
    x9 = jnp.concatenate(taps, axis=0)                   # [9*C_in, b_blk*hw]

    # Zero the wrap-around columns of the dw=0 / dw=2 taps.  The mask is a
    # precomputed grid-invariant input in the operand dtype, so the bf16 MXU
    # path is preserved (no f32 promotion) and no per-step iota/mod is needed.
    x9 = x9 * mask_ref[...]

    # ---- Single K = 9*C_in MXU matmul with f32 accumulation. ----------------
    acc = jnp.dot(w_ref[...], x9, preferred_element_type=jnp.float32)
    feat = jnp.maximum(acc + bconv_ref[...], 0.0)        # bias + ReLU (f32 VPU)

    # ---- Per-image lane-aligned stores + fused GAP/FC head. -----------------
    inv_hw = 1.0 / hw
    score_rows = []
    for b in range(b_blk):
        f_b = feat[:, b * hw:(b + 1) * hw]               # lane-aligned [C_out, hw]
        feat_ref[b] = f_b.astype(feat_ref.dtype)         # lane-dense store
        pooled = jnp.sum(f_b, axis=-1, keepdims=True) * inv_hw        # [C_out, 1]
        score_rows.append(
            jnp.sum(pooled * fcw_ref[...], axis=0, keepdims=True) + fcb_ref[...])
    scores = (jnp.concatenate(score_rows, axis=0) if b_blk > 1
              else score_rows[0])                        # [b_blk, NC_PAD]
    scores_ref[0] = scores.astype(scores_ref.dtype)      # lane-dense (128 lanes)


def fused_forward(x_flat, mask, w_flat, b_col, fcw_pad, fcb_pad, *,
                  h, w, c_out, b_blk):
    """x_flat: [N_pad, C_in, flat_pad] height-padded, flattened, guard-padded,
    lane-aligned.  N_pad is a multiple of b_blk."""
    n_pad, c_in, flat_pad = x_flat.shape
    hw = h * w
    n_blocks = n_pad // b_blk
    nc_pad = fcw_pad.shape[-1]

    kernel = functools.partial(_fused_net_kernel, h=h, w=w,
                               c_out=c_out, b_blk=b_blk)
    feat, scores = pl.pallas_call(
        kernel,
        out_shape=(
            jax.ShapeDtypeStruct((n_pad, c_out, hw), jnp.float32),
            jax.ShapeDtypeStruct((n_blocks, b_blk, nc_pad), jnp.float32),
        ),
        grid_spec=pltpu.PrefetchScalarGridSpec(
            num_scalar_prefetch=0,
            grid=(n_blocks,),
            in_specs=[
                pl.BlockSpec((b_blk, c_in, flat_pad), lambda b: (b, 0, 0)),
                pl.BlockSpec((9 * c_in, b_blk * hw), lambda b: (0, 0)),
                pl.BlockSpec((c_out, 9 * c_in), lambda b: (0, 0)),
                pl.BlockSpec((c_out, 1), lambda b: (0, 0)),
                pl.BlockSpec((c_out, nc_pad), lambda b: (0, 0)),
                pl.BlockSpec((1, nc_pad), lambda b: (0, 0)),
            ],
            out_specs=[
                pl.BlockSpec((b_blk, c_out, hw), lambda b: (b, 0, 0)),
                pl.BlockSpec((1, b_blk, nc_pad), lambda b: (b, 0, 0)),
            ],
        ),
        compiler_params=pltpu.CompilerParams(
            dimension_semantics=("parallel",)),
    )(x_flat, mask, w_flat, b_col, fcw_pad, fcb_pad)
    return feat, scores


# ----------------------------------------------------------------------------
# ProtobufModel analogue
# ----------------------------------------------------------------------------
class ProtobufModelPallas:
    """JAX/Pallas analogue of ProtobufModel for a fixed representative net."""

    def __init__(self, c_in=4, c_out=32, num_classes=8, seed=0,
                 compute_dtype=jnp.bfloat16, max_batch_block=4):
        self.c_in, self.c_out, self.num_classes = c_in, c_out, num_classes
        self.compute_dtype = compute_dtype
        self.max_batch_block = max_batch_block

        # "init_net": deterministic parameter fill (caffe2 OIHW conv layout).
        k1, k2, k3, k4 = jax.random.split(jax.random.PRNGKey(seed), 4)
        self.conv_w = 0.1 * jax.random.normal(
            k1, (c_out, c_in, 3, 3), dtype=jnp.float32)
        self.conv_b = 0.1 * jax.random.normal(k2, (c_out,), dtype=jnp.float32)
        self.fc_w = 0.1 * jax.random.normal(
            k3, (c_out, num_classes), dtype=jnp.float32)
        self.fc_b = 0.1 * jax.random.normal(
            k4, (num_classes,), dtype=jnp.float32)

        # Kernel layouts hoisted out of the forward path:
        #   W_flat[co, t*C_in + c] = conv_w[co, c, t//3, t%3]   (one K=36 matmul)
        self._w_flat = jnp.transpose(self.conv_w, (0, 2, 3, 1)).reshape(
            c_out, 9 * c_in).astype(compute_dtype)
        self._b_col = self.conv_b.reshape(c_out, 1)                     # f32
        # FC padded to a full 128-lane tile -> unmasked, lane-dense score store.
        self._fcw_pad = jnp.zeros((c_out, _NC_PAD), jnp.float32
                                  ).at[:, :num_classes].set(self.fc_w)
        self._fcb_pad = jnp.zeros((1, _NC_PAD), jnp.float32
                                  ).at[:, :num_classes].set(self.fc_b)

        self._input_blobs = ["data"]

    def _edge_mask(self, h, w, b_blk):
        """[9*C_in, b_blk*H*W] multiplicative mask (operand dtype) that zeroes
        the wrap-around columns of the dw=0 / dw=2 taps.  Computed once per
        call shape on the host side; grid-invariant kernel input."""
        hw = h * w
        wpos = jnp.arange(hw, dtype=jnp.int32) % w
        per_dw = jnp.stack([wpos != 0,                 # dw = 0 (needs left pad)
                            jnp.ones((hw,), bool),     # dw = 1
                            wpos != (w - 1)], axis=0)  # dw = 2 (needs right pad)
        tap = jnp.stack([per_dw[dw] for _dh in range(3) for dw in range(3)],
                        axis=0)                                        # [9, hw]
        mask = jnp.repeat(tap, self.c_in, axis=0)                      # [9*C_in, hw]
        return jnp.tile(mask, (1, b_blk)).astype(self.compute_dtype)

    def __call__(self, inputs):
        """inputs: tuple of arrays matching self._input_blobs (NCHW data)."""
        assert len(inputs) == len(self._input_blobs)
        (x,) = inputs                                    # [N, C_in, H, W]
        n, c, h, w = x.shape
        assert c == self.c_in

        # Batch blocking: amortize the ~0.35us/step grid overhead, but keep at
        # least two "parallel" grid steps when n >= 2 (both v7x TensorCores).
        b_blk = max(1, min(self.max_batch_block, pl.cdiv(n, 2)))
        n_blocks = pl.cdiv(n, b_blk)
        n_pad = n_blocks * b_blk

        # Height-pad, flatten spatial, 1-element guard pads, then pad the flat
        # length to a multiple of 128 so the input DMA tile is lane-aligned.
        # (~1.2x the input volume; no 9x im2col in HBM.)
        xc = x.astype(self.compute_dtype)
        xp = jnp.pad(xc, ((0, n_pad - n), (0, 0), (1, 1), (0, 0)))
        x_flat = xp.reshape(n_pad, c, (h + 2) * w)
        flat_raw = (h + 2) * w + 2
        flat_pad = pl.cdiv(flat_raw, _LANE) * _LANE
        x_flat = jnp.pad(x_flat,
                         ((0, 0), (0, 0), (1, flat_pad - (h + 2) * w - 1)))

        mask = self._edge_mask(h, w, b_blk)

        feat_flat, scores_pad = fused_forward(
            x_flat, mask, self._w_flat, self._b_col,
            self._fcw_pad, self._fcb_pad,
            h=h, w=w, c_out=self.c_out, b_blk=b_blk)

        # [N, C_out, H*W] -> NCHW is a contiguous (free) reshape.
        feat_nchw = feat_flat[:n].reshape(n, self.c_out, h, w)
        scores = scores_pad.reshape(n_pad, _NC_PAD)[:n, :self.num_classes]

        # tuple[Tensor] out, matching external_output
        return (feat_nchw, scores)


# ----------------------------------------------------------------------------
# Reference (pure JAX) for a quick sanity check
# ----------------------------------------------------------------------------
def _reference_forward(model, x):
    """Inputs/weights are quantized to the kernel's compute dtype so the check
    isolates the kernel's math (bf16 operands, f32 accumulation everywhere)."""
    cd = model.compute_dtype
    xq = x.astype(cd).astype(jnp.float32)
    wq = model.conv_w.astype(cd).astype(jnp.float32)
    y = jax.lax.conv_general_dilated(
        xq, wq, window_strides=(1, 1), padding=((1, 1), (1, 1)),
        dimension_numbers=("NCHW", "OIHW", "NCHW"),
        precision=jax.lax.Precision.HIGHEST,
        preferred_element_type=jnp.float32)
    y = jnp.maximum(y + model.conv_b[None, :, None, None], 0.0)
    pooled = jnp.mean(y, axis=(2, 3))
    scores = jnp.dot(pooled, model.fc_w,
                     precision=jax.lax.Precision.HIGHEST) + model.fc_b[None, :]
    return y, scores


if __name__ == "__main__":
    key = jax.random.PRNGKey(0)
    x = jax.random.normal(key, (2, 4, 16, 16), dtype=jnp.float32)  # NCHW

    model = ProtobufModelPallas(c_in=4, c_out=32, num_classes=8, seed=0)
    feat, scores = model((x,))
    jax.block_until_ready(feat)
    jax.block_until_ready(scores)

    ref_feat, ref_scores = _reference_forward(model, x)
    assert feat.shape == (2, 32, 16, 16) and scores.shape == (2, 8)
    assert jnp.allclose(feat, ref_feat, atol=2e-3, rtol=2e-3)
    assert jnp.allclose(scores, ref_scores, atol=2e-3, rtol=2e-3)

    print("KERNEL_OK")
</pallas_src>

<mosaic_0001>
module attributes {stable_mosaic.version = 11 : i64} {
  func.func @_fused_net_kernel(%arg0: i32, %arg1: memref<1x4x384xbf16, #tpu.memory_space<vmem>>, %arg2: memref<36x256xbf16, #tpu.memory_space<vmem>>, %arg3: memref<32x36xbf16, #tpu.memory_space<vmem>>, %arg4: memref<32x1xf32, #tpu.memory_space<vmem>>, %arg5: memref<32x128xf32, #tpu.memory_space<vmem>>, %arg6: memref<1x128xf32, #tpu.memory_space<vmem>>, %arg7: memref<1x32x256xf32, #tpu.memory_space<vmem>>, %arg8: memref<1x1x128xf32, #tpu.memory_space<vmem>>) attributes {dimension_semantics = [#tpu.dimension_semantics<parallel>], iteration_bounds = array<i64: 2>, scalar_prefetch = 0 : i64, scratch_operands = 0 : i64, tpu.core_type = #tpu.core_type<tc>, window_params = [{transform_indices = @transform_0, window_bounds = array<i64: 1, 4, 384>}, {pipeline_mode = #tpu.pipeline_mode<synchronous>, transform_indices = @transform_1, window_bounds = array<i64: 36, 256>}, {pipeline_mode = #tpu.pipeline_mode<synchronous>, transform_indices = @transform_2, window_bounds = array<i64: 32, 36>}, {pipeline_mode = #tpu.pipeline_mode<synchronous>, transform_indices = @transform_3, window_bounds = array<i64: 32, 1>}, {pipeline_mode = #tpu.pipeline_mode<synchronous>, transform_indices = @transform_4, window_bounds = array<i64: 32, 128>}, {pipeline_mode = #tpu.pipeline_mode<synchronous>, transform_indices = @transform_5, window_bounds = array<i64: 1, 128>}, {transform_indices = @transform_6, window_bounds = array<i64: 1, 32, 256>}, {transform_indices = @transform_7, window_bounds = array<i64: 1, 1, 128>}]} {
    %c0 = arith.constant 0 : index
    %c0_0 = arith.constant 0 : index
    %c0_1 = arith.constant 0 : index
    %0 = vector.load %arg1[%c0, %c0_0, %c0_1] : memref<1x4x384xbf16, #tpu.memory_space<vmem>>, vector<1x4x384xbf16>
    %1 = vector.shape_cast %0 : vector<1x4x384xbf16> to vector<4x384xbf16>
    %2 = vector.extract_strided_slice %1 {offsets = [0, 0], sizes = [4, 256], strides = [1, 1]} : vector<4x384xbf16> to vector<4x256xbf16>
    %3 = vector.extract_strided_slice %1 {offsets = [0, 1], sizes = [4, 256], strides = [1, 1]} : vector<4x384xbf16> to vector<4x256xbf16>
    %4 = vector.extract_strided_slice %1 {offsets = [0, 2], sizes = [4, 256], strides = [1, 1]} : vector<4x384xbf16> to vector<4x256xbf16>
    %5 = vector.extract_strided_slice %1 {offsets = [0, 16], sizes = [4, 256], strides = [1, 1]} : vector<4x384xbf16> to vector<4x256xbf16>
    %6 = vector.extract_strided_slice %1 {offsets = [0, 17], sizes = [4, 256], strides = [1, 1]} : vector<4x384xbf16> to vector<4x256xbf16>
    %7 = vector.extract_strided_slice %1 {offsets = [0, 18], sizes = [4, 256], strides = [1, 1]} : vector<4x384xbf16> to vector<4x256xbf16>
    %8 = vector.extract_strided_slice %1 {offsets = [0, 32], sizes = [4, 256], strides = [1, 1]} : vector<4x384xbf16> to vector<4x256xbf16>
    %9 = vector.extract_strided_slice %1 {offsets = [0, 33], sizes = [4, 256], strides = [1, 1]} : vector<4x384xbf16> to vector<4x256xbf16>
    %10 = vector.extract_strided_slice %1 {offsets = [0, 34], sizes = [4, 256], strides = [1, 1]} : vector<4x384xbf16> to vector<4x256xbf16>
    %11 = tpu.concatenate %2, %3, %4, %5, %6, %7, %8, %9, %10 in 0 : vector<4x256xbf16>, vector<4x256xbf16>, vector<4x256xbf16>, vector<4x256xbf16>, vector<4x256xbf16>, vector<4x256xbf16>, vector<4x256xbf16>, vector<4x256xbf16>, vector<4x256xbf16> -> vector<36x256xbf16>
    %c0_2 = arith.constant 0 : index
    %c0_3 = arith.constant 0 : index
    %12 = vector.load %arg2[%c0_2, %c0_3] : memref<36x256xbf16, #tpu.memory_space<vmem>>, vector<36x256xbf16>
    %13 = arith.mulf %11, %12 : vector<36x256xbf16>
    %c0_4 = arith.constant 0 : index
    %c0_5 = arith.constant 0 : index
    %14 = vector.load %arg3[%c0_4, %c0_5] : memref<32x36xbf16, #tpu.memory_space<vmem>>, vector<32x36xbf16>
    %cst = arith.constant dense<0.000000e+00> : vector<32x256xf32>
    %15 = tpu.matmul %14, %13, %cst {dimension_numbers = #tpu.dot_dimension_numbers<[1], [0], [0], [1], [0, 0, 1, 1], [], []>} : vector<32x36xbf16>, vector<36x256xbf16>, vector<32x256xf32> -> vector<32x256xf32>
    %c0_6 = arith.constant 0 : index
    %c0_7 = arith.constant 0 : index
    %16 = vector.load %arg4[%c0_6, %c0_7] : memref<32x1xf32, #tpu.memory_space<vmem>>, vector<32x1xf32>
    %17 = vector.broadcast %16 : vector<32x1xf32> to vector<32x256xf32>
    %18 = arith.addf %15, %17 : vector<32x256xf32>
    %cst_8 = arith.constant 0.000000e+00 : f32
    %19 = vector.broadcast %cst_8 : f32 to vector<32x256xf32>
    %20 = arith.maximumf %18, %19 : vector<32x256xf32>
    %c0_9 = arith.constant 0 : index
    %c0_10 = arith.constant 0 : index
    %c0_11 = arith.constant 0 : index
    %21 = vector.load %arg7[%c0_9, %c0_10, %c0_11] : memref<1x32x256xf32, #tpu.memory_space<vmem>>, vector<1x32x256xf32>
    %22 = vector.shape_cast %21 : vector<1x32x256xf32> to vector<32x256xf32>
    %23 = vector.shape_cast %20 : vector<32x256xf32> to vector<1x32x256xf32>
    tpu.vector_store %arg7[%c0_9, %c0_10, %c0_11], %23 {strides = array<i32>} : memref<1x32x256xf32, #tpu.memory_space<vmem>>, vector<1x32x256xf32>,
    %cst_12 = arith.constant dense<0.000000e+00> : vector<32xf32>
    %24 = vector.multi_reduction <add>, %20, %cst_12 [1] : vector<32x256xf32> to vector<32xf32>
    %25 = vector.shape_cast %24 : vector<32xf32> to vector<32x1xf32>
    %cst_13 = arith.constant 3.906250e-03 : f32
    %26 = vector.broadcast %cst_13 : f32 to vector<32x1xf32>
    %27 = arith.mulf %25, %26 : vector<32x1xf32>
    %c0_14 = arith.constant 0 : index
    %c0_15 = arith.constant 0 : index
    %28 = vector.load %arg5[%c0_14, %c0_15] : memref<32x128xf32, #tpu.memory_space<vmem>>, vector<32x128xf32>
    %29 = vector.broadcast %27 : vector<32x1xf32> to vector<32x128xf32>
    %30 = arith.mulf %29, %28 : vector<32x128xf32>
    %cst_16 = arith.constant dense<0.000000e+00> : vector<128xf32>
    %31 = vector.multi_reduction <add>, %30, %cst_16 [0] : vector<32x128xf32> to vector<128xf32>
    %32 = vector.shape_cast %31 : vector<128xf32> to vector<1x128xf32>
    %c0_17 = arith.constant 0 : index
    %c0_18 = arith.constant 0 : index
    %33 = vector.load %arg6[%c0_17, %c0_18] : memref<1x128xf32, #tpu.memory_space<vmem>>, vector<1x128xf32>
    %34 = arith.addf %32, %33 : vector<1x128xf32>
    %c0_19 = arith.constant 0 : index
    %c0_20 = arith.constant 0 : index
    %c0_21 = arith.constant 0 : index
    %35 = vector.load %arg8[%c0_19, %c0_20, %c0_21] : memref<1x1x128xf32, #tpu.memory_space<vmem>>, vector<1x1x128xf32>
    %36 = vector.shape_cast %35 : vector<1x1x128xf32> to vector<1x128xf32>
    %37 = vector.shape_cast %34 : vector<1x128xf32> to vector<1x1x128xf32>
    tpu.vector_store %arg8[%c0_19, %c0_20, %c0_21], %37 {strides = array<i32>} : memref<1x1x128xf32, #tpu.memory_space<vmem>>, vector<1x1x128xf32>,
    return
  }
  func.func @transform_0(%arg0: i32) -> (i32, i32, i32) {
    %c0_i32 = arith.constant 0 : i32
    %c0_i32_0 = arith.constant 0 : i32
    %c0_i32_1 = arith.constant 0 : i32
    return %arg0, %c0_i32, %c0_i32_0 : i32, i32, i32
  }
  func.func @transform_1(%arg0: i32) -> (i32, i32) {
    %c0_i32 = arith.constant 0 : i32
    %c0_i32_0 = arith.constant 0 : i32
    %c0_i32_1 = arith.constant 0 : i32
    return %c0_i32, %c0_i32_0 : i32, i32
  }
  func.func @transform_2(%arg0: i32) -> (i32, i32) {
    %c0_i32 = arith.constant 0 : i32
    %c0_i32_0 = arith.constant 0 : i32
    %c0_i32_1 = arith.constant 0 : i32
    return %c0_i32, %c0_i32_0 : i32, i32
  }
  func.func @transform_3(%arg0: i32) -> (i32, i32) {
    %c0_i32 = arith.constant 0 : i32
    %c0_i32_0 = arith.constant 0 : i32
    %c0_i32_1 = arith.constant 0 : i32
    return %c0_i32, %c0_i32_0 : i32, i32
  }
  func.func @transform_4(%arg0: i32) -> (i32, i32) {
    %c0_i32 = arith.constant 0 : i32
    %c0_i32_0 = arith.constant 0 : i32
    %c0_i32_1 = arith.constant 0 : i32
    return %c0_i32, %c0_i32_0 : i32, i32
  }
  func.func @transform_5(%arg0: i32) -> (i32, i32) {
    %c0_i32 = arith.constant 0 : i32
    %c0_i32_0 = arith.constant 0 : i32
    %c0_i32_1 = arith.constant 0 : i32
    return %c0_i32, %c0_i32_0 : i32, i32
  }
  func.func @transform_6(%arg0: i32) -> (i32, i32, i32) {
    %c0_i32 = arith.constant 0 : i32
    %c0_i32_0 = arith.constant 0 : i32
    %c0_i32_1 = arith.constant 0 : i32
    return %arg0, %c0_i32, %c0_i32_0 : i32, i32, i32
  }
  func.func @transform_7(%arg0: i32) -> (i32, i32, i32) {
    %c0_i32 = arith.constant 0 : i32
    %c0_i32_0 = arith.constant 0 : i32
    %c0_i32_1 = arith.constant 0 : i32
    return %arg0, %c0_i32, %c0_i32_0 : i32, i32, i32
  }
}

</mosaic_0001>

<llo_original>
// kernel: tpu_custom_call.1
$region0: #{tpu_custom_call.1}
  #allocation0 [shape = 'u32[]', space=smem, size = 0x4, offset = 0x4, fixed_abs, tag = 'smem constant byte address 0x4 - core index']
  #allocation1 [shape = 'u32[144,128]{1,0:T(1,128)}', space=vmem, size = 0x12000, scoped, tag = 'internal scratch']
  %s0 = inlined_call_operand.hbm [shape: bf16[2,4,384], index: 0, kind: input, shape index: {}]
  %s1 = inlined_call_operand.hbm [shape: bf16[36,256], index: 1, kind: input, shape index: {}]
  %s2 = inlined_call_operand.vmem [shape: bf16[32,36], index: 2, kind: input, shape index: {}]
  %s3 = inlined_call_operand.vmem [shape: f32[32,1], index: 3, kind: input, shape index: {}]
  %s4 = inlined_call_operand.vmem [shape: f32[32,128], index: 4, kind: input, shape index: {}]
  %s5 = inlined_call_operand.vmem [shape: f32[1,128], index: 5, kind: input, shape index: {}]
  %s6 = inlined_call_operand.hbm [shape: f32[2,32,256], index: 6, kind: output, shape index: {0}]
  %s7 = inlined_call_operand.hbm [shape: f32[2,1,128], index: 7, kind: output, shape index: {1}]
  %8 = xla_tuple %s6, %s7
  %s9 = sld [smem:[#allocation0]]
  $region73: #{tpu_custom_call.1} parent=0
    _
  %s11 = ssub.s32 1, %s9
  %s12 = scalar_select 0, %s11, %s9
  $region1: #{tpu_custom_call.1} parent=0
    #allocation2 [shape = 'u8[6144]{0}', space=vmem, size = 0x1800, scoped, tag = 'input window, operand 0']
    #allocation3 [shape = 's32[2]{0}', space=sflag, size = 0x8, scoped, tag = 'scoped memory for tpu_custom_call.1']
    #allocation4 [shape = 's32[2]{0}', space=sflag, size = 0x8, scoped, tag = 'scoped memory for tpu_custom_call.1']
    #allocation5 [shape = 'u8[20480]{0}', space=vmem, size = 0x5000, scoped, tag = 'input window, operand 1, single buffered']
    #allocation6 [shape = 's32[1]{0}', space=sflag, size = 0x4, scoped, tag = 'scoped memory for tpu_custom_call.1']
    #allocation7 [shape = 'u8[65536]{0}', space=vmem, size = 0x10000, scoped, tag = 'output window, operand 0']
    #allocation8 [shape = 'u8[1024]{0}', space=vmem, size = 0x400, scoped, tag = 'output window, operand 1']
    #allocation9 [shape = 's32[2]{0}', space=sflag, size = 0x8, scoped, tag = 'scoped memory for tpu_custom_call.1']
    %13 = vsyncpa [#allocation3], 0
    %s14 = scalar_lea.sflag [#allocation3], 1
    %15 = vsyncpa %s14, 0
    %16 = vsyncpa [#allocation6], 0
    %17 = vsyncpa [#allocation4], 0
    %s18 = scalar_lea.sflag [#allocation4], 1
    %19 = vsyncpa %s18, 0
    %20 = vsyncpa [#allocation9], 0
    %s21 = scalar_lea.sflag [#allocation9], 1
    %22 = vsyncpa %s21, 0
    loop: start=0, step=1, limit=4
    $region2: #{tpu_custom_call.1} parent=1 // loop_pre_header
      _
    $region3: #{tpu_custom_call.1} parent=1 // loop_header
      %s24 = sphi 0, %s28
      %p25 = scmp.ge.s32.totalorder %s24, 4
      %s34 = sphi 0, %s36
      %s37 = sphi 0, %s34
      %s38 = sphi 0, %s37
      %s54 = sphi 0, %s38
      %s58 = sphi 0, %s58
      %s60 = sphi 0, %s58
      %s61 = sphi 0, %s60
      %s75 = sphi 0, %s61
      %s79 = sphi 0, %s79
      %s81 = sphi 0, %s79
      %s82 = sphi 0, %s81
      %s96 = sphi 0, %s82
      %s100 = sphi 0, %s100
      %s102 = sphi 0, %s100
      %s103 = sphi 0, %s102
      %s117 = sphi 0, %s103
      %s121 = sphi 0, %s121
      %s123 = sphi 0, %s121
      %s124 = sphi 0, %s123
      %s138 = sphi 0, %s124
      %s142 = sphi 0, %s142
      %s144 = sphi 0, %s142
      %s145 = sphi 0, %s144
      %s159 = sphi 0, %s145
      %s165 = sphi 0, %s167
      %s168 = sphi 0, %s165
      %s169 = sphi 0, %s168
      %s185 = sphi 0, %s169
      %s191 = sphi 0, %s193
      %s194 = sphi 0, %s191
      %s195 = sphi 0, %s194
      %s211 = sphi 0, %s195
    $region4: #{tpu_custom_call.1} parent=1 // loop_header_branch
      %27 = sbr.rel (%p25) target = $region8
    $region5: #{tpu_custom_call.1} parent=1 // loop_body
      %s29 = ssub.s32 %s24, 1
      %s30 = ssub.s32 %s24, 2
      %s31 = sadd.s32 %s24, 1
      %s32 = ssub.s32 %s24, %s31
      %p33 = scmp.eq.s32.totalorder %s32, 0
      %s35 = sadd.s32 %s34, 1
      %s36 = scalar_select %p33, %s34, %s35
      %p39 = pneg %p33
      %p40 = scmp.eq.s32.totalorder %s24, 1
      %p41 = por %p39, %p40
      %p42 = scmp.ne.s32.totalorder %s34, %s37
      %p43 = scmp.eq.s32.totalorder %s24, 0
      %p44 = por %p42, %p43
      %p45 = scmp.ne.s32.totalorder %s34, %s37
      %p46 = scmp.eq.s32.totalorder %s29, 1
      %p47 = por %p45, %p46
      %p48 = scmp.ne.s32.totalorder %s37, %s38
      %p49 = scmp.eq.s32.totalorder %s29, 0
      %p50 = por %p48, %p49
      %p51 = scmp.ne.s32.totalorder %s37, %s38
      %p52 = scmp.eq.s32.totalorder %s30, 1
      %p53 = por %p51, %p52
      %p55 = scmp.ne.s32.totalorder %s38, %s54
      %p56 = scmp.eq.s32.totalorder %s30, 0
      %p57 = por %p55, %p56
      %s59 = sadd.s32 %s58, 1
      %p62 = scmp.eq.s32.totalorder %s24, 1
      %p63 = scmp.ne.s32.totalorder %s58, %s60
      %p64 = scmp.eq.s32.totalorder %s24, 0
      %p65 = por %p63, %p64
      %p66 = scmp.ne.s32.totalorder %s58, %s60
      %p67 = scmp.eq.s32.totalorder %s29, 1
      %p68 = por %p66, %p67
      %p69 = scmp.ne.s32.totalorder %s60, %s61
      %p70 = scmp.eq.s32.totalorder %s29, 0
      %p71 = por %p69, %p70
      %p72 = scmp.ne.s32.totalorder %s60, %s61
      %p73 = scmp.eq.s32.totalorder %s30, 1
      %p74 = por %p72, %p73
      %p76 = scmp.ne.s32.totalorder %s61, %s75
      %p77 = scmp.eq.s32.totalorder %s30, 0
      %p78 = por %p76, %p77
      %s80 = sadd.s32 %s79, 1
      %p83 = scmp.eq.s32.totalorder %s24, 1
      %p84 = scmp.ne.s32.totalorder %s79, %s81
      %p85 = scmp.eq.s32.totalorder %s24, 0
      %p86 = por %p84, %p85
      %p87 = scmp.ne.s32.totalorder %s79, %s81
      %p88 = scmp.eq.s32.totalorder %s29, 1
      %p89 = por %p87, %p88
      %p90 = scmp.ne.s32.totalorder %s81, %s82
      %p91 = scmp.eq.s32.totalorder %s29, 0
      %p92 = por %p90, %p91
      %p93 = scmp.ne.s32.totalorder %s81, %s82
      %p94 = scmp.eq.s32.totalorder %s30, 1
      %p95 = por %p93, %p94
      %p97 = scmp.ne.s32.totalorder %s82, %s96
      %p98 = scmp.eq.s32.totalorder %s30, 0
      %p99 = por %p97, %p98
      %s101 = sadd.s32 %s100, 1
      %p104 = scmp.eq.s32.totalorder %s24, 1
      %p105 = scmp.ne.s32.totalorder %s100, %s102
      %p106 = scmp.eq.s32.totalorder %s24, 0
      %p107 = por %p105, %p106
      %p108 = scmp.ne.s32.totalorder %s100, %s102
      %p109 = scmp.eq.s32.totalorder %s29, 1
      %p110 = por %p108, %p109
      %p111 = scmp.ne.s32.totalorder %s102, %s103
      %p112 = scmp.eq.s32.totalorder %s29, 0
      %p113 = por %p111, %p112
      %p114 = scmp.ne.s32.totalorder %s102, %s103
      %p115 = scmp.eq.s32.totalorder %s30, 1
      %p116 = por %p114, %p115
      %p118 = scmp.ne.s32.totalorder %s103, %s117
      %p119 = scmp.eq.s32.totalorder %s30, 0
      %p120 = por %p118, %p119
      %s122 = sadd.s32 %s121, 1
      %p125 = scmp.eq.s32.totalorder %s24, 1
      %p126 = scmp.ne.s32.totalorder %s121, %s123
      %p127 = scmp.eq.s32.totalorder %s24, 0
      %p128 = por %p126, %p127
      %p129 = scmp.ne.s32.totalorder %s121, %s123
      %p130 = scmp.eq.s32.totalorder %s29, 1
      %p131 = por %p129, %p130
      %p132 = scmp.ne.s32.totalorder %s123, %s124
      %p133 = scmp.eq.s32.totalorder %s29, 0
      %p134 = por %p132, %p133
      %p135 = scmp.ne.s32.totalorder %s123, %s124
      %p136 = scmp.eq.s32.totalorder %s30, 1
      %p137 = por %p135, %p136
      %p139 = scmp.ne.s32.totalorder %s124, %s138
      %p140 = scmp.eq.s32.totalorder %s30, 0
      %p141 = por %p139, %p140
      %s143 = sadd.s32 %s142, 1
      %p146 = scmp.eq.s32.totalorder %s24, 1
      %p147 = scmp.ne.s32.totalorder %s142, %s144
      %p148 = scmp.eq.s32.totalorder %s24, 0
      %p149 = por %p147, %p148
      %p150 = scmp.ne.s32.totalorder %s142, %s144
      %p151 = scmp.eq.s32.totalorder %s29, 1
      %p152 = por %p150, %p151
      %p153 = scmp.ne.s32.totalorder %s144, %s145
      %p154 = scmp.eq.s32.totalorder %s29, 0
      %p155 = por %p153, %p154
      %p156 = scmp.ne.s32.totalorder %s144, %s145
      %p157 = scmp.eq.s32.totalorder %s30, 1
      %p158 = por %p156, %p157
      %p160 = scmp.ne.s32.totalorder %s145, %s159
      %p161 = scmp.eq.s32.totalorder %s30, 0
      %p162 = por %p160, %p161
      %s163 = ssub.s32 %s24, %s31
      %p164 = scmp.eq.s32.totalorder %s163, 0
      %s166 = sadd.s32 %s165, 1
      %s167 = scalar_select %p164, %s165, %s166
      %p170 = pneg %p164
      %p171 = scmp.eq.s32.totalorder %s24, 1
      %p172 = por %p170, %p171
      %p173 = scmp.ne.s32.totalorder %s165, %s168
      %p174 = scmp.eq.s32.totalorder %s24, 0
      %p175 = por %p173, %p174
      %p176 = scmp.ne.s32.totalorder %s165, %s168
      %p177 = scmp.eq.s32.totalorder %s29, 1
      %p178 = por %p176, %p177
      %p179 = scmp.ne.s32.totalorder %s168, %s169
      %p180 = scmp.eq.s32.totalorder %s29, 0
      %p181 = por %p179, %p180
      %p182 = scmp.ne.s32.totalorder %s168, %s169
      %p183 = scmp.eq.s32.totalorder %s30, 1
      %p184 = por %p182, %p183
      %p186 = scmp.ne.s32.totalorder %s169, %s185
      %p187 = scmp.eq.s32.totalorder %s30, 0
      %p188 = por %p186, %p187
      %s189 = ssub.s32 %s24, %s31
      %p190 = scmp.eq.s32.totalorder %s189, 0
      %s192 = sadd.s32 %s191, 1
      %s193 = scalar_select %p190, %s191, %s192
      %p196 = pneg %p190
      %p197 = scmp.eq.s32.totalorder %s24, 1
      %p198 = por %p196, %p197
      %p199 = scmp.ne.s32.totalorder %s191, %s194
      %p200 = scmp.eq.s32.totalorder %s24, 0
      %p201 = por %p199, %p200
      %p202 = scmp.ne.s32.totalorder %s191, %s194
      %p203 = scmp.eq.s32.totalorder %s29, 1
      %p204 = por %p202, %p203
      %p205 = scmp.ne.s32.totalorder %s194, %s195
      %p206 = scmp.eq.s32.totalorder %s29, 0
      %p207 = por %p205, %p206
      %p208 = scmp.ne.s32.totalorder %s194, %s195
      %p209 = scmp.eq.s32.totalorder %s30, 1
      %p210 = por %p208, %p209
      %p212 = scmp.ne.s32.totalorder %s195, %s211
      %p213 = scmp.eq.s32.totalorder %s30, 0
      %p214 = por %p212, %p213
      %p215 = scmp.le.s32.totalorder 1, %s24
      %p216 = scmp.lt.s32.totalorder %s24, 3
      %p217 = pnand %p215, %p216
      %p218 = pneg %p217
      // Predicated region
      $region9: #{tpu_custom_call.1} parent=5 // pred_check
        _
      $region10: #{tpu_custom_call.1} parent=5 // pred_check_branch
        %220 = sbr.rel (%p217) target = $region12
      $region11: #{tpu_custom_call.1} parent=5 // pred_region
        %s221 = ssub.s32 %s24, 1
        // Predicated region
        $region13: #{tpu_custom_call.1} parent=11 // pred_check
          %p222 = pneg %p71
        $region14: #{tpu_custom_call.1} parent=11 // pred_check_branch
          %224 = sbr.rel (%p222) target = $region16
        $region15: #{tpu_custom_call.1} parent=11 // pred_region
          %s226 = ssub.s32 640, 640
          %227 = vsyncadd [#allocation6], %s226
          %s228 = sshll.u32 [#allocation5], 4
          %s229 = int_to_ptr.vmem [resolvable:$true] %s228
          %234 = dma.hbm_to_vmem [thread:$0]  %s1, 640, %s229, [#allocation6], 128, 128, 8
        $region16: #{tpu_custom_call.1} parent=11 // pred_fallthru
          _
        // Predicated region
        $region17: #{tpu_custom_call.1} parent=11 // pred_check
          %p235 = pneg %p92
        $region18: #{tpu_custom_call.1} parent=11 // pred_check_branch
          %237 = sbr.rel (%p235) target = $region20
        $region19: #{tpu_custom_call.1} parent=11 // pred_region
          _
        $region20: #{tpu_custom_call.1} parent=11 // pred_fallthru
          _
        // Predicated region
        $region21: #{tpu_custom_call.1} parent=11 // pred_check
          %p238 = pneg %p113
        $region22: #{tpu_custom_call.1} parent=11 // pred_check_branch
          %240 = sbr.rel (%p238) target = $region24
        $region23: #{tpu_custom_call.1} parent=11 // pred_region
          _
        $region24: #{tpu_custom_call.1} parent=11 // pred_fallthru
          _
        // Predicated region
        $region25: #{tpu_custom_call.1} parent=11 // pred_check
          %p241 = pneg %p134
        $region26: #{tpu_custom_call.1} parent=11 // pred_check_branch
          %243 = sbr.rel (%p241) target = $region28
        $region27: #{tpu_custom_call.1} parent=11 // pred_region
          _
        $region28: #{tpu_custom_call.1} parent=11 // pred_fallthru
          _
        // Predicated region
        $region29: #{tpu_custom_call.1} parent=11 // pred_check
          %p244 = pneg %p155
        $region30: #{tpu_custom_call.1} parent=11 // pred_check_branch
          %246 = sbr.rel (%p244) target = $region32
        $region31: #{tpu_custom_call.1} parent=11 // pred_region
          _
        $region32: #{tpu_custom_call.1} parent=11 // pred_fallthru
          _
      $region12: #{tpu_custom_call.1} parent=5 // pred_fallthru
        _
      %p247 = scmp.lt.s32.totalorder %s24, 2
      // Predicated region
      $region33: #{tpu_custom_call.1} parent=5 // pred_check
        %p248 = pneg %p247
      $region34: #{tpu_custom_call.1} parent=5 // pred_check_branch
        %250 = sbr.rel (%p248) target = $region36
      $region35: #{tpu_custom_call.1} parent=5 // pred_region
        // Predicated region
        $region37: #{tpu_custom_call.1} parent=35 // pred_check
          %p251 = pneg %p44
        $region38: #{tpu_custom_call.1} parent=35 // pred_check_branch
          %253 = sbr.rel (%p251) target = $region40
        $region39: #{tpu_custom_call.1} parent=35 // pred_region
          %s254 = sand.u32 %s34, 1
          %s255 = scalar_lea.sflag [#allocation3], %s254
          %s256 = sand.u32 %s34, 1
          %s257 = smul.addr %s256, 6
          %s258 = scalar_lea.vmem [#allocation2], %s257
          %s260 = ssub.s32 96, 96
          %261 = vsyncadd %s255, %s260
          %s262 = smul.addr %s24, 3
          %s263 = smul.addr %s262, 32
          %s264 = scalar_lea.hbm %s0, %s263
          %s266 = sshll.u32 %s258, 4
          %s267 = int_to_ptr.vmem [resolvable:$true] %s266
          %269 = dma.hbm_to_vmem [thread:$0]  %s264, 96, %s267, %s255
        $region40: #{tpu_custom_call.1} parent=35 // pred_fallthru
          _
      $region36: #{tpu_custom_call.1} parent=5 // pred_fallthru
        _
      %p270 = scmp.le.s32.totalorder 1, %s24
      %p271 = scmp.lt.s32.totalorder %s24, 3
      %p272 = pnand %p270, %p271
      %p273 = pneg %p272
      // Predicated region
      $region41: #{tpu_custom_call.1} parent=5 // pred_check
        _
      $region42: #{tpu_custom_call.1} parent=5 // pred_check_branch
        %275 = sbr.rel (%p272) target = $region44
      $region43: #{tpu_custom_call.1} parent=5 // pred_region
        %s276 = ssub.s32 %s24, 1
        %s277 = sand.u32 %s37, 1
        %s278 = scalar_lea.sflag [#allocation3], %s277
        %s279 = sand.u32 %s37, 1
        %s280 = smul.addr %s279, 6
        %s281 = scalar_lea.vmem [#allocation2], %s280
        // Predicated region
        $region45: #{tpu_custom_call.1} parent=43 // pred_check
          %p282 = pneg %p50
        $region46: #{tpu_custom_call.1} parent=43 // pred_check_branch
          %284 = sbr.rel (%p282) target = $region48
        $region47: #{tpu_custom_call.1} parent=43 // pred_region
          %285 = dma.done %s278, 96
        $region48: #{tpu_custom_call.1} parent=43 // pred_fallthru
          _
        // Predicated region
        $region49: #{tpu_custom_call.1} parent=43 // pred_check
          %p286 = pneg %p71
        $region50: #{tpu_custom_call.1} parent=43 // pred_check_branch
          %288 = sbr.rel (%p286) target = $region52
        $region51: #{tpu_custom_call.1} parent=43 // pred_region
          %289 = dma.done [#allocation6], 640
        $region52: #{tpu_custom_call.1} parent=43 // pred_fallthru
          _
        %s290 = sand.u32 %s37, 1
        %s291 = scalar_lea.sflag [#allocation3], %s290
        %s292 = sand.u32 %s37, 1
        %s293 = smul.addr %s292, 6
        %s294 = scalar_lea.vmem [#allocation2], %s293
        %p295 = pneg %p50
        %p296 = pneg %p47
        %p297 = pneg %p71
        %p298 = pneg %p68
        %p299 = pneg %p92
        %p300 = pneg %p89
        %p301 = pneg %p113
        %p302 = pneg %p110
        %p303 = pneg %p134
        %p304 = pneg %p131
        %p305 = pneg %p155
        %p306 = pneg %p152
        %p307 = pneg %p181
        %p308 = pneg %p178
        %s309 = sand.u32 %s168, 1
        %s310 = scalar_lea.sflag [#allocation4], %s309
        %s311 = sand.u32 %s168, 1
        %s312 = smul.addr %s311, 64
        %s313 = scalar_lea.vmem [#allocation7], %s312
        %p314 = pneg %p207
        %p315 = pneg %p204
        %s316 = sand.u32 %s194, 1
        %s317 = scalar_lea.sflag [#allocation9], %s316
        %s318 = sand.u32 %s194, 1
        %s319 = scalar_lea.vmem [#allocation8], %s318
        %v321 = vld [vmem:[%s281] sm:$0x3f]
        %v324 = vunpack.c.l.s4 1983009808
        %v325 = vunpack.c.0.s8 %v324
        %v326 = vlaneseq
        %v327 = vshrl.u32 %v326, 7
        %v328 = vsub.s32 %v325, %v327
        %v329 = vrot.slane %v321, %v328
        %v330 = vcombine.high %v329, %v329
        %v331 = vcombine.low %v321, %v321
        %v333 = vunpack.c.l.s4 1983009808
        %v334 = vunpack.c.0.s8 %v333
        %v335 = vlaneseq
        %v336 = vshrl.u32 %v335, 7
        %v337 = vsub.s32 %v334, %v336
        %v338 = vrot.slane %v331, %v337
        %v339 = vcombine.high %v338, %v338
        %340 = vrot.lane.b32.xlu0 %v338, 127
        %v341 = vpop.permute.xlu0 %340
        %342 = vrot.lane.b32.xlu0 %v339, 127
        %v343 = vpop.permute.xlu0 %342
        %344 = vrot.lane.b32.xlu0 %v329, 127
        %v345 = vpop.permute.xlu0 %344
        %vm346 = vcmask 1039360
        %v347 = vsel %vm346, %v341, %v343
        %v348 = vsel %vm346, %v343, %v345
        %v349 = vcombine.high %v321, %v321
        %v351 = vunpack.c.l.s4 1983009808
        %v352 = vunpack.c.0.s8 %v351
        %v353 = vlaneseq
        %v354 = vshrl.u32 %v353, 7
        %v355 = vsub.s32 %v352, %v354
        %v356 = vrot.slane %v349, %v355
        %v357 = vcombine.low %v329, %v329
        %v358 = vcombine.low %v356, %v356
        %359 = vrot.lane.b32.xlu0 %v357, 126
        %v360 = vpop.permute.xlu0 %359
        %361 = vrot.lane.b32.xlu0 %v329, 126
        %v362 = vpop.permute.xlu0 %361
        %363 = vrot.lane.b32.xlu0 %v358, 126
        %v364 = vpop.permute.xlu0 %363
        %vm365 = vcmask 1031168
        %v366 = vsel %vm365, %v360, %v362
        %v367 = vsel %vm365, %v362, %v364
        %v368 = vcombine.low %v338, %v338
        %369 = vrot.lane.b32.xlu0 %v368, 112
        %v370 = vpop.permute.xlu0 %369
        %371 = vrot.lane.b32.xlu0 %v338, 112
        %v372 = vpop.permute.xlu0 %371
        %373 = vrot.lane.b32.xlu0 %v357, 112
        %v374 = vpop.permute.xlu0 %373
        %vm375 = vcmask 916480
        %v376 = vsel %vm375, %v370, %v372
        %v377 = vsel %vm375, %v372, %v374
        %378 = vrot.lane.b32.xlu0 %v329, 111
        %v379 = vpop.permute.xlu0 %378
        %380 = vrot.lane.b32.xlu0 %v330, 111
        %v381 = vpop.permute.xlu0 %380
        %382 = vrot.lane.b32.xlu0 %v356, 111
        %v383 = vpop.permute.xlu0 %382
        %vm384 = vcmask 908288
        %v385 = vsel %vm384, %v379, %v381
        %v386 = vsel %vm384, %v381, %v383
        %387 = vrot.lane.b32.xlu0 %v338, 110
        %v388 = vpop.permute.xlu0 %387
        %389 = vrot.lane.b32.xlu0 %v339, 110
        %v390 = vpop.permute.xlu0 %389
        %391 = vrot.lane.b32.xlu0 %v329, 110
        %v392 = vpop.permute.xlu0 %391
        %vm393 = vcmask 900096
        %v394 = vsel %vm393, %v388, %v390
        %v395 = vsel %vm393, %v390, %v392
        %396 = vrot.lane.b32.xlu0 %v357, 96
        %v397 = vpop.permute.xlu0 %396
        %398 = vrot.lane.b32.xlu0 %v329, 96
        %v399 = vpop.permute.xlu0 %398
        %400 = vrot.lane.b32.xlu0 %v358, 96
        %v401 = vpop.permute.xlu0 %400
        %vm402 = vcmask 785408
        %v403 = vsel %vm402, %v397, %v399
        %v404 = vsel %vm402, %v399, %v401
        %405 = vrot.lane.b32.xlu0 %v368, 95
        %v406 = vpop.permute.xlu0 %405
        %407 = vrot.lane.b32.xlu0 %v338, 95
        %v408 = vpop.permute.xlu0 %407
        %409 = vrot.lane.b32.xlu0 %v357, 95
        %v410 = vpop.permute.xlu0 %409
        %vm411 = vcmask 777216
        %v412 = vsel %vm411, %v406, %v408
        %v413 = vsel %vm411, %v408, %v410
        %414 = vrot.lane.b32.xlu0 %v329, 94
        %v415 = vpop.permute.xlu0 %414
        %416 = vrot.lane.b32.xlu0 %v330, 94
        %v417 = vpop.permute.xlu0 %416
        %418 = vrot.lane.b32.xlu0 %v356, 94
        %v419 = vpop.permute.xlu0 %418
        %vm420 = vcmask 769024
        %v421 = vsel %vm420, %v415, %v417
        %v422 = vsel %vm420, %v417, %v419
        %vm425 = vcmask 1041408
        %v428 = vsel %vm425, %v329, %v347
        %v431 = vsel %vm425, %v330, %v348
        %vm432 = vcmask 1043456
        %v434 = vsel %vm432, %v428, %v366
        %v436 = vsel %vm432, %v431, %v367
        %vm437 = vcmask 1045504
        %v439 = vsel %vm437, %v434, %v376
        %v442 = vsel %vm437, %v436, %v377
        %v446 = vsel %vm425, %v385, %v394
        %v449 = vsel %vm425, %v386, %v395
        %v451 = vsel %vm432, %v446, %v403
        %v453 = vsel %vm432, %v449, %v404
        %v455 = vsel %vm437, %v451, %v412
        %v458 = vsel %vm437, %v453, %v413
        %v460 = vld [vmem:[#allocation5] sm:$0xff]
        %v461 = vld [vmem:[#allocation5 + $0x8] sm:$0xff]
        %v462 = vld [vmem:[#allocation5 + $0x10] sm:$0xff]
        %v463 = vld [vmem:[#allocation5 + $0x18] sm:$0xff]
        %v464 = vld [vmem:[#allocation5 + $0x20] sm:$0x33]
        %v470 = vunpack.c.l.b16 %v460
        %v471 = vunpack.c.h.b16 %v460
        %v472 = vunpack.c.l.b16 %v461
        %v473 = vunpack.c.h.b16 %v461
        %v474 = vunpack.c.l.b16 %v462
        %v475 = vunpack.c.h.b16 %v462
        %v476 = vunpack.c.l.b16 %v463
        %v477 = vunpack.c.h.b16 %v463
        %v478 = vunpack.c.l.b16 %v464
        %v479 = vunpack.c.h.b16 %v464
        %v480 = vpack.c.b16 %v472, %v470
        %v481 = vpack.c.b16 %v473, %v471
        %v482 = vpack.c.b16 %v476, %v474
        %v483 = vpack.c.b16 %v477, %v475
        %v484 = vpack.c.b16 %v478, %v478
        %v485 = vpack.c.b16 %v479, %v479
        %v492 = vmul.bf16 %v439, %v480
        %v493 = vmul.bf16 %v442, %v481
        %v494 = vmul.bf16 %v455, %v482
        %v495 = vmul.bf16 %v458, %v483
        %v496 = vmul.bf16 %v421, %v484
        %v497 = vmul.bf16 %v422, %v485
        %v498 = vld [vmem:[%s2] sm:$0xf]
        %v499 = vld [vmem:[%s2 + $0x4] sm:$0xf]
        %v500 = vld [vmem:[%s2 + $0x8] sm:$0xf]
        %v501 = vld [vmem:[%s2 + $0xc] sm:$0xf]
        %v502 = vld [vmem:[%s3] sm:$0xff]
        %v503 = vld [vmem:[%s3 + $0x8] sm:$0xff]
        %v504 = vld [vmem:[%s3 + $0x10] sm:$0xff]
        %v505 = vld [vmem:[%s3 + $0x18] sm:$0xff]
        %507 = vset.pattern.permute.xlu0 0
        %508 = vperm.xlu0 %507, %v502
        %v509 = vpop.permute.xlu0 %508
        %512 = vset.pattern.permute.xlu0 0
        %513 = vperm.xlu0 %512, %v503
        %v514 = vpop.permute.xlu0 %513
        %517 = vset.pattern.permute.xlu0 0
        %518 = vperm.xlu0 %517, %v504
        %v519 = vpop.permute.xlu0 %518
        %522 = vset.pattern.permute.xlu0 0
        %523 = vperm.xlu0 %522, %v505
        %v524 = vpop.permute.xlu0 %523
        %v530 = vunpack.c.l.b16 %v498
        %v531 = vunpack.c.l.b16 %v499
        %v532 = vunpack.c.l.b16 %v500
        %v533 = vunpack.c.l.b16 %v501
        %v534 = vpack.c.b16 %v531, %v530
        %v535 = vpack.c.b16 %v533, %v532
        %vm536 = vcmask 293888
        %v538 = vsel %vm536, %v534, 0
        %v541 = vsel %vm536, %v535, 0
        %v544 = vsel %vm425, %v496, 0
        %v547 = vsel %vm425, %v497, 0
        %549 = vmatprep.subr.bf16.mxu0 %v493
        %550 = vmatpush1.bf16.msra.mxu0 %v492
        %551 = vmatprep.subr.bf16.mxu0 %v495
        %552 = vmatpush1.bf16.msra.mxu0 %v494
        %553 = vmatprep.subr.bf16.mxu0 %v547
        %554 = vmatpush1.bf16.msra.mxu0 %v544
        %555 = vmatprep.subr.bf16.mxu0 0
        %556 = vmatpush1.bf16.msra.mxu0 0
        %557 = vmatprep.subr.bf16.mxu0 0
        %558 = vmatpush1.bf16.msra.mxu0 0
        %559 = vmatprep.subr.bf16.mxu0 0
        %560 = vmatpush1.bf16.msra.mxu0 0
        %561 = vmatprep.subr.bf16.mxu0 0
        %562 = vmatpush1.bf16.msra.mxu0 0
        %563 = vmatprep.subr.bf16.mxu0 0
        %564 = vmatpush1.bf16.msra.mxu0 0
        %565 = vmatprep.subr.bf16.mxu0 0
        %566 = vmatpush1.bf16.msra.mxu0 0
        %567 = vmatprep.subr.bf16.mxu0 0
        %568 = vmatpush1.bf16.msra.mxu0 0
        %569 = vmatprep.subr.bf16.mxu0 0
        %570 = vmatpush1.bf16.msra.mxu0 0
        %571 = vmatprep.subr.bf16.mxu0 0
        %572 = vmatpush1.bf16.msra.mxu0 0
        %573 = vmatprep.subr.bf16.mxu0 0
        %574 = vmatpush1.bf16.msra.mxu0 0
        %575 = vmatprep.subr.bf16.mxu0 0
        %576 = vmatpush1.bf16.msra.mxu0 0
        %577 = vmatprep.subr.bf16.mxu0 0
        %578 = vmatpush1.bf16.msra.mxu0 0
        %579 = vmatprep.subr.bf16.mxu0 0
        %580 = vmatpush1.bf16.msra.mxu0 0
        %581 = vmatprep.mubr.bf16.mxu0 0
        %582 = vmatmul.mubr.bf16.gmra.mrb[0].mxu0 %v538
        %v583 = vpop.f32.mrb[0].mxu0
        %v584 = vadd.f32 %v509, %v583
        %v585 = vpop.f32.mrb[0].mxu0
        %v586 = vadd.f32 %v509, %v585
        %v587 = vpop.f32.mrb[0].mxu0
        %v588 = vadd.f32 %v514, %v587
        %v589 = vpop.f32.mrb[0].mxu0
        %v590 = vadd.f32 %v514, %v589
        %591 = vmatprep.mubr.bf16.mxu0 0
        %592 = vmatmul.mubr.bf16.gmra.mrb[0].mxu0 %v541
        %v593 = vpop.f32.mrb[0].mxu0
        %v594 = vadd.f32 %v519, %v593
        %v595 = vpop.f32.mrb[0].mxu0
        %v596 = vadd.f32 %v519, %v595
        %v597 = vpop.f32.mrb[0].mxu0
        %v598 = vadd.f32 %v524, %v597
        %v599 = vpop.f32.mrb[0].mxu0
        %v600 = vadd.f32 %v524, %v599
        %601 = vdwg.mxu0
        %v602 = vmax.f32 %v584, 0.0
        %v603 = vmax.f32 %v586, 0.0
        %v604 = vmax.f32 %v588, 0.0
        %v605 = vmax.f32 %v590, 0.0
        %v606 = vmax.f32 %v594, 0.0
        %v607 = vmax.f32 %v596, 0.0
        %v608 = vmax.f32 %v598, 0.0
        %v609 = vmax.f32 %v600, 0.0
        %610 = vst [vmem:[%s313] sm:$0xff] %v602
        %611 = vst [vmem:[%s313 + $0x8] sm:$0xff] %v603
        %612 = vst [vmem:[%s313 + $0x10] sm:$0xff] %v604
        %613 = vst [vmem:[%s313 + $0x18] sm:$0xff] %v605
        %614 = vst [vmem:[%s313 + $0x20] sm:$0xff] %v606
        %615 = vst [vmem:[%s313 + $0x28] sm:$0xff] %v607
        %616 = vst [vmem:[%s313 + $0x30] sm:$0xff] %v608
        %617 = vst [vmem:[%s313 + $0x38] sm:$0xff] %v609
        %v618 = vadd.f32 %v602, %v603
        %619 = vadd.xlane.f32.xlu0 %v618
        %v620 = vpop.xlane.xlu0 %619
        %v621 = vadd.f32 %v604, %v605
        %622 = vadd.xlane.f32.xlu0 %v621
        %v623 = vpop.xlane.xlu0 %622
        %v624 = vadd.f32 %v606, %v607
        %625 = vadd.xlane.f32.xlu0 %v624
        %v626 = vpop.xlane.xlu0 %625
        %v627 = vadd.f32 %v608, %v609
        %628 = vadd.xlane.f32.xlu0 %v627
        %v629 = vpop.xlane.xlu0 %628
        %v630 = vmul.f32 %v620, 0.00390625
        %v631 = vmul.f32 %v623, 0.00390625
        %v632 = vmul.f32 %v626, 0.00390625
        %v633 = vmul.f32 %v629, 0.00390625
        %v634 = vld [vmem:[%s4] sm:$0xff]
        %v635 = vld [vmem:[%s4 + $0x8] sm:$0xff]
        %v636 = vld [vmem:[%s4 + $0x10] sm:$0xff]
        %v637 = vld [vmem:[%s4 + $0x18] sm:$0xff]
        %v638 = vmul.f32 %v630, %v634
        %v639 = vmul.f32 %v631, %v635
        %v640 = vmul.f32 %v632, %v636
        %v641 = vmul.f32 %v633, %v637
        %v642 = vadd.f32 %v638, %v639
        %v643 = vadd.f32 %v642, %v640
        %v644 = vadd.f32 %v643, %v641
        %v645 = vrot.slane %v644, 4
        %v646 = vadd.f32 %v644, %v645
        %v647 = vrot.slane %v646, 2
        %v648 = vadd.f32 %v646, %v647
        %v649 = vrot.slane %v648, 1
        %v650 = vadd.f32 %v648, %v649
        %v651 = vld [vmem:[%s5] sm:$0x1]
        %v652 = vadd.f32 %v650, %v651
        %653 = vst [vmem:[%s319] sm:$0x1] %v652
        %s654 = sand.u32 %s168, 1
        %s655 = scalar_lea.sflag [#allocation4], %s654
        %s656 = sand.u32 %s168, 1
        %s657 = smul.addr %s656, 64
        %s658 = scalar_lea.vmem [#allocation7], %s657
        %s659 = sand.u32 %s194, 1
        %s660 = scalar_lea.sflag [#allocation9], %s659
        %s661 = sand.u32 %s194, 1
        %s662 = scalar_lea.vmem [#allocation8], %s661
        // Predicated region
        $region53: #{tpu_custom_call.1} parent=43 // pred_check
          %p663 = pneg %p178
        $region54: #{tpu_custom_call.1} parent=43 // pred_check_branch
          %665 = sbr.rel (%p663) target = $region56
        $region55: #{tpu_custom_call.1} parent=43 // pred_region
          %s667 = ssub.s32 1024, 1024
          %668 = vsyncadd %s655, %s667
          %s669 = smul.addr %s29, 8
          %s670 = smul.addr %s669, 128
          %s671 = scalar_lea.hbm %s6, %s670
          %s672 = sshll.u32 %s658, 4
          %s673 = int_to_ptr.vmem [resolvable:$true] %s672
          %678 = dma.vmem_to_hbm [thread:$0]  %s673, 1024, %s671, %s655, 256, 256, 16
        $region56: #{tpu_custom_call.1} parent=43 // pred_fallthru
          _
        // Predicated region
        $region57: #{tpu_custom_call.1} parent=43 // pred_check
          %p679 = pneg %p204
        $region58: #{tpu_custom_call.1} parent=43 // pred_check_branch
          %681 = sbr.rel (%p679) target = $region60
        $region59: #{tpu_custom_call.1} parent=43 // pred_region
          %s683 = ssub.s32 16, 16
          %684 = vsyncadd %s660, %s683
          %s685 = smul.addr %s29, 16
          %s686 = scalar_lea.hbm %s7, %s685
          %s688 = sshll.u32 %s662, 4
          %s689 = int_to_ptr.vmem [resolvable:$true] %s688
          %691 = dma.vmem_to_hbm [thread:$0]  %s689, 16, %s686, %s660
        $region60: #{tpu_custom_call.1} parent=43 // pred_fallthru
          _
      $region44: #{tpu_custom_call.1} parent=5 // pred_fallthru
        _
      %p692 = scmp.le.s32.totalorder 2, %s24
      // Predicated region
      $region61: #{tpu_custom_call.1} parent=5 // pred_check
        %p693 = pneg %p692
      $region62: #{tpu_custom_call.1} parent=5 // pred_check_branch
        %695 = sbr.rel (%p693) target = $region64
      $region63: #{tpu_custom_call.1} parent=5 // pred_region
        %s696 = ssub.s32 %s24, 2
        // Predicated region
        $region65: #{tpu_custom_call.1} parent=63 // pred_check
          %p697 = pneg %p184
        $region66: #{tpu_custom_call.1} parent=63 // pred_check_branch
          %699 = sbr.rel (%p697) target = $region68
        $region67: #{tpu_custom_call.1} parent=63 // pred_region
          %s700 = sand.u32 %s169, 1
          %s701 = scalar_lea.sflag [#allocation4], %s700
          %s702 = sand.u32 %s169, 1
          %s703 = smul.addr %s702, 64
          %s704 = scalar_lea.vmem [#allocation7], %s703
          %705 = dma.done %s701, 1024
        $region68: #{tpu_custom_call.1} parent=63 // pred_fallthru
          _
        // Predicated region
        $region69: #{tpu_custom_call.1} parent=63 // pred_check
          %p706 = pneg %p210
        $region70: #{tpu_custom_call.1} parent=63 // pred_check_branch
          %708 = sbr.rel (%p706) target = $region72
        $region71: #{tpu_custom_call.1} parent=63 // pred_region
          %s709 = sand.u32 %s195, 1
          %s710 = scalar_lea.sflag [#allocation9], %s709
          %s711 = sand.u32 %s195, 1
          %s712 = scalar_lea.vmem [#allocation8], %s711
          %713 = dma.done %s710, 16
        $region72: #{tpu_custom_call.1} parent=63 // pred_fallthru
          _
      $region64: #{tpu_custom_call.1} parent=5 // pred_fallthru
        _
    $region6: #{tpu_custom_call.1} parent=1 // loop_footer
      %s28 = sadd.s32 1, %s24
    $region7: #{tpu_custom_call.1} parent=1 // loop_footer_branch
      %23 = sbr.rel target = $region3
    $region8: #{tpu_custom_call.1} parent=1 // loop_exit
      _
    %714 = vsyncpa [#allocation3], 1
    %s715 = scalar_lea.sflag [#allocation3], 1
    %716 = vsyncpa %s715, 1
    %717 = vsyncpa [#allocation6], 1
    %718 = vsyncpa [#allocation4], 1
    %s719 = scalar_lea.sflag [#allocation4], 1
    %720 = vsyncpa %s719, 1
    %721 = vsyncpa [#allocation9], 1
    %s722 = scalar_lea.sflag [#allocation9], 1
    %723 = vsyncpa %s722, 1

</llo_original>
